<compile_context>
chip_gen: v6e
topology: v6e:2x2x1
jax: 0.10.0
libtpu: 0.0.40
codegen_flags: <defaults>
</compile_context>

<pallas_src>
import functools

import jax
import jax.numpy as jnp
from jax.experimental import pallas as pl
from jax.experimental.pallas import tpu as pltpu

NEG_SLOPE = 0.01        # F.leaky_relu default negative_slope
HIDDEN = 100            # logical hidden width (PyTorch module)
HIDDEN_PAD = 128        # padded to a full 128-lane vreg column
OUT_DIM = 32
MAX_BATCH_TILE = 512    # per-step batch tile; tiny VMEM footprint even double-buffered on v7x


def _leaky_relu(x):
    return jnp.where(x > 0, x, NEG_SLOPE * x)


def mlp_kernel(x_ref, w1_ref, b1_ref, w2_ref, b2_ref, o_ref):
    # Two MXU matmuls (bf16 operands, f32 accumulation) + f32 VPU bias/leaky_relu, fused in VMEM.
    x = x_ref[...].astype(jnp.bfloat16)                       # (tb, t_dim)
    h = jnp.dot(x, w1_ref[...], preferred_element_type=jnp.float32) + b1_ref[...]
    h = _leaky_relu(h)                                        # (tb, 128) f32
    o = jnp.dot(h.astype(jnp.bfloat16), w2_ref[...],
                preferred_element_type=jnp.float32) + b2_ref[...]
    o_ref[...] = _leaky_relu(o).astype(o_ref.dtype)           # (tb, 32)


def _round_up(x, m):
    return (x + m - 1) // m * m


@jax.jit
def t_module_forward(t, w1, b1, w2, b2):
    """t: (B, t_dim) f32. w1: (t_dim, 100) f32, b1: (100,) f32, w2: (100, 32) f32, b2: (32,) f32.

    Returns (B, 32) f32, matching T_module.forward.
    """
    B, t_dim = t.shape
    b1 = b1.reshape(1, HIDDEN).astype(jnp.float32)
    b2 = b2.reshape(1, OUT_DIM).astype(jnp.float32)

    # Zero-pad hidden dim 100 -> 128 (exact: padded b1 cols are 0, padded w2 rows are 0)
    # and cast matmul weights to bf16 once, wrapper-side.
    w1_p = jnp.zeros((t_dim, HIDDEN_PAD), jnp.bfloat16).at[:, :HIDDEN].set(w1.astype(jnp.bfloat16))
    b1_p = jnp.zeros((1, HIDDEN_PAD), jnp.float32).at[:, :HIDDEN].set(b1)
    w2_p = jnp.zeros((HIDDEN_PAD, OUT_DIM), jnp.bfloat16).at[:HIDDEN, :].set(w2.astype(jnp.bfloat16))

    # Batch tiling: tile must be a multiple of 8 (sublanes); pad B up to a tile multiple.
    tb = MAX_BATCH_TILE if B >= MAX_BATCH_TILE else _round_up(B, 8)
    Bp = _round_up(B, tb)
    t_p = jnp.pad(t, ((0, Bp - B), (0, 0))) if Bp != B else t

    out = pl.pallas_call(
        mlp_kernel,
        out_shape=jax.ShapeDtypeStruct((Bp, OUT_DIM), jnp.float32),
        grid_spec=pltpu.PrefetchScalarGridSpec(
            num_scalar_prefetch=0,
            grid=(Bp // tb,),
            in_specs=[
                pl.BlockSpec((tb, t_dim), lambda i: (i, 0)),         # x: pipelined over batch
                pl.BlockSpec((t_dim, HIDDEN_PAD), lambda i: (0, 0)),  # weights/biases: VMEM-resident
                pl.BlockSpec((1, HIDDEN_PAD), lambda i: (0, 0)),
                pl.BlockSpec((HIDDEN_PAD, OUT_DIM), lambda i: (0, 0)),
                pl.BlockSpec((1, OUT_DIM), lambda i: (0, 0)),
            ],
            out_specs=pl.BlockSpec((tb, OUT_DIM), lambda i: (i, 0)),
        ),
        compiler_params=pltpu.CompilerParams(
            # Batch tiles are independent -> shard grid steps across v7x's 2 TensorCores.
            dimension_semantics=("parallel",),
        ),
    )(t_p, w1_p, b1_p, w2_p, b2)
    return out[:B]


def init_params(key, t_dim):
    """Deterministic init mimicking nn.Linear's U(-1/sqrt(fan_in), 1/sqrt(fan_in))."""
    k1, k2, k3, k4 = jax.random.split(key, 4)
    bound1 = 1.0 / jnp.sqrt(t_dim)
    bound2 = 1.0 / jnp.sqrt(float(HIDDEN))
    w1 = jax.random.uniform(k1, (t_dim, HIDDEN), jnp.float32, -bound1, bound1)
    b1 = jax.random.uniform(k2, (HIDDEN,), jnp.float32, -bound1, bound1)
    w2 = jax.random.uniform(k3, (HIDDEN, OUT_DIM), jnp.float32, -bound2, bound2)
    b2 = jax.random.uniform(k4, (OUT_DIM,), jnp.float32, -bound2, bound2)
    return w1, b1, w2, b2


def reference_forward(t, w1, b1, w2, b2):
    """Same math as the PyTorch module, with matmul operands in bf16 / f32 accumulation to
    mirror the kernel's MXU precision."""
    h = jnp.dot(t.astype(jnp.bfloat16), w1.astype(jnp.bfloat16),
                preferred_element_type=jnp.float32) + b1.reshape(1, -1)
    h = _leaky_relu(h)
    o = jnp.dot(h.astype(jnp.bfloat16), w2.astype(jnp.bfloat16),
                preferred_element_type=jnp.float32) + b2.reshape(1, -1)
    return _leaky_relu(o)


if __name__ == "__main__":
    key = jax.random.PRNGKey(0)
    k_in, k_par, k_in2 = jax.random.split(key, 3)

    batch, t_dim = 8, 16
    t = jax.random.normal(k_in, (batch, t_dim), jnp.float32)
    w1, b1, w2, b2 = init_params(k_par, t_dim)

    out = jax.block_until_ready(t_module_forward(t, w1, b1, w2, b2))
    ref = reference_forward(t, w1, b1, w2, b2)
    assert out.shape == (batch, OUT_DIM)
    assert jnp.allclose(out, ref, atol=2e-3, rtol=2e-3), float(jnp.max(jnp.abs(out - ref)))

    # Also exercise the multi-step batch grid + padding path (B not a multiple of the tile).
    batch2 = 600
    t2 = jax.random.normal(k_in2, (batch2, t_dim), jnp.float32)
    out2 = jax.block_until_ready(t_module_forward(t2, w1, b1, w2, b2))
    ref2 = reference_forward(t2, w1, b1, w2, b2)
    assert out2.shape == (batch2, OUT_DIM)
    assert jnp.allclose(out2, ref2, atol=2e-3, rtol=2e-3), float(jnp.max(jnp.abs(out2 - ref2)))

    print("KERNEL_OK")
</pallas_src>

<mosaic_0001>
module attributes {stable_mosaic.version = 11 : i64} {
  func.func @mlp_kernel(%arg0: i32, %arg1: memref<8x16xf32, #tpu.memory_space<vmem>>, %arg2: memref<16x128xbf16, #tpu.memory_space<vmem>>, %arg3: memref<1x128xf32, #tpu.memory_space<vmem>>, %arg4: memref<128x32xbf16, #tpu.memory_space<vmem>>, %arg5: memref<1x32xf32, #tpu.memory_space<vmem>>, %arg6: memref<8x32xf32, #tpu.memory_space<vmem>>) attributes {dimension_semantics = [#tpu.dimension_semantics<parallel>], iteration_bounds = array<i64: 1>, scalar_prefetch = 0 : i64, scratch_operands = 0 : i64, tpu.core_type = #tpu.core_type<tc>, window_params = [{transform_indices = @transform_0, window_bounds = array<i64: 8, 16>}, {pipeline_mode = #tpu.pipeline_mode<synchronous>, transform_indices = @transform_1, window_bounds = array<i64: 16, 128>}, {pipeline_mode = #tpu.pipeline_mode<synchronous>, transform_indices = @transform_2, window_bounds = array<i64: 1, 128>}, {pipeline_mode = #tpu.pipeline_mode<synchronous>, transform_indices = @transform_3, window_bounds = array<i64: 128, 32>}, {pipeline_mode = #tpu.pipeline_mode<synchronous>, transform_indices = @transform_4, window_bounds = array<i64: 1, 32>}, {transform_indices = @transform_5, window_bounds = array<i64: 8, 32>}]} {
    %c0 = arith.constant 0 : index
    %c0_0 = arith.constant 0 : index
    %0 = vector.load %arg1[%c0, %c0_0] : memref<8x16xf32, #tpu.memory_space<vmem>>, vector<8x16xf32>
    %1 = arith.truncf %0 : vector<8x16xf32> to vector<8x16xbf16>
    %c0_1 = arith.constant 0 : index
    %c0_2 = arith.constant 0 : index
    %2 = vector.load %arg2[%c0_1, %c0_2] : memref<16x128xbf16, #tpu.memory_space<vmem>>, vector<16x128xbf16>
    %cst = arith.constant dense<0.000000e+00> : vector<8x128xf32>
    %3 = tpu.matmul %1, %2, %cst {dimension_numbers = #tpu.dot_dimension_numbers<[1], [0], [0], [1], [0, 0, 1, 1], [], []>} : vector<8x16xbf16>, vector<16x128xbf16>, vector<8x128xf32> -> vector<8x128xf32>
    %c0_3 = arith.constant 0 : index
    %c0_4 = arith.constant 0 : index
    %4 = vector.load %arg3[%c0_3, %c0_4] : memref<1x128xf32, #tpu.memory_space<vmem>>, vector<1x128xf32>
    %5 = vector.broadcast %4 : vector<1x128xf32> to vector<8x128xf32>
    %6 = arith.addf %3, %5 : vector<8x128xf32>
    %cst_5 = arith.constant 0.000000e+00 : f32
    %7 = vector.broadcast %cst_5 : f32 to vector<8x128xf32>
    %8 = arith.cmpf ogt, %6, %7 : vector<8x128xf32>
    %cst_6 = arith.constant 0.00999999977 : f32
    %9 = vector.broadcast %cst_6 : f32 to vector<8x128xf32>
    %10 = arith.mulf %9, %6 : vector<8x128xf32>
    %11 = arith.select %8, %6, %10 : vector<8x128xi1>, vector<8x128xf32>
    %12 = arith.truncf %11 : vector<8x128xf32> to vector<8x128xbf16>
    %c0_7 = arith.constant 0 : index
    %c0_8 = arith.constant 0 : index
    %13 = vector.load %arg4[%c0_7, %c0_8] : memref<128x32xbf16, #tpu.memory_space<vmem>>, vector<128x32xbf16>
    %cst_9 = arith.constant dense<0.000000e+00> : vector<8x32xf32>
    %14 = tpu.matmul %12, %13, %cst_9 {dimension_numbers = #tpu.dot_dimension_numbers<[1], [0], [0], [1], [0, 0, 1, 1], [], []>} : vector<8x128xbf16>, vector<128x32xbf16>, vector<8x32xf32> -> vector<8x32xf32>
    %c0_10 = arith.constant 0 : index
    %c0_11 = arith.constant 0 : index
    %15 = vector.load %arg5[%c0_10, %c0_11] : memref<1x32xf32, #tpu.memory_space<vmem>>, vector<1x32xf32>
    %16 = vector.broadcast %15 : vector<1x32xf32> to vector<8x32xf32>
    %17 = arith.addf %14, %16 : vector<8x32xf32>
    %cst_12 = arith.constant 0.000000e+00 : f32
    %18 = vector.broadcast %cst_12 : f32 to vector<8x32xf32>
    %19 = arith.cmpf ogt, %17, %18 : vector<8x32xf32>
    %cst_13 = arith.constant 0.00999999977 : f32
    %20 = vector.broadcast %cst_13 : f32 to vector<8x32xf32>
    %21 = arith.mulf %20, %17 : vector<8x32xf32>
    %22 = arith.select %19, %17, %21 : vector<8x32xi1>, vector<8x32xf32>
    %c0_14 = arith.constant 0 : index
    %c0_15 = arith.constant 0 : index
    %23 = vector.load %arg6[%c0_14, %c0_15] : memref<8x32xf32, #tpu.memory_space<vmem>>, vector<8x32xf32>
    tpu.vector_store %arg6[%c0_14, %c0_15], %22 {strides = array<i32>} : memref<8x32xf32, #tpu.memory_space<vmem>>, vector<8x32xf32>,
    return
  }
  func.func @transform_0(%arg0: i32) -> (i32, i32) {
    %c0_i32 = arith.constant 0 : i32
    %c0_i32_0 = arith.constant 0 : i32
    return %arg0, %c0_i32 : i32, i32
  }
  func.func @transform_1(%arg0: i32) -> (i32, i32) {
    %c0_i32 = arith.constant 0 : i32
    %c0_i32_0 = arith.constant 0 : i32
    %c0_i32_1 = arith.constant 0 : i32
    return %c0_i32, %c0_i32_0 : i32, i32
  }
  func.func @transform_2(%arg0: i32) -> (i32, i32) {
    %c0_i32 = arith.constant 0 : i32
    %c0_i32_0 = arith.constant 0 : i32
    %c0_i32_1 = arith.constant 0 : i32
    return %c0_i32, %c0_i32_0 : i32, i32
  }
  func.func @transform_3(%arg0: i32) -> (i32, i32) {
    %c0_i32 = arith.constant 0 : i32
    %c0_i32_0 = arith.constant 0 : i32
    %c0_i32_1 = arith.constant 0 : i32
    return %c0_i32, %c0_i32_0 : i32, i32
  }
  func.func @transform_4(%arg0: i32) -> (i32, i32) {
    %c0_i32 = arith.constant 0 : i32
    %c0_i32_0 = arith.constant 0 : i32
    %c0_i32_1 = arith.constant 0 : i32
    return %c0_i32, %c0_i32_0 : i32, i32
  }
  func.func @transform_5(%arg0: i32) -> (i32, i32) {
    %c0_i32 = arith.constant 0 : i32
    %c0_i32_0 = arith.constant 0 : i32
    return %arg0, %c0_i32 : i32, i32
  }
}

</mosaic_0001>

<llo_original>
// kernel: t_module_forward.1
$region0: #{t_module_forward.1}
  #allocation0 [shape = 'u32[]', space=smem, size = 0x4, offset = 0x4, fixed_abs, tag = 'smem constant byte address 0x4 - core index']
  #allocation1 [shape = 'u32[144,128]{1,0:T(1,128)}', space=vmem, size = 0x12000, scoped, tag = 'internal scratch']
  %s0 = inlined_call_operand.vmem [shape: f32[8,16], index: 0, kind: input, shape index: {}]
  %s1 = inlined_call_operand.vmem [shape: bf16[16,128], index: 1, kind: input, shape index: {}]
  %s2 = inlined_call_operand.vmem [shape: f32[1,128], index: 2, kind: input, shape index: {}]
  %s3 = inlined_call_operand.vmem [shape: bf16[128,32], index: 3, kind: input, shape index: {}]
  %s4 = inlined_call_operand.vmem [shape: f32[1,32], index: 4, kind: input, shape index: {}]
  %s5 = inlined_call_operand.hbm [shape: f32[8,32], index: 5, kind: output, shape index: {}]
  %s6 = sld [smem:[#allocation0]]
  $region30: #{t_module_forward.1} parent=0
    _
  %s8 = ssub.s32 1, %s6
  %s9 = scalar_select 0, %s8, %s6
  $region1: #{t_module_forward.1} parent=0
    #allocation2 [shape = 'u8[4096]{0}', space=vmem, size = 0x1000, scoped, tag = 'output window, operand 0, single buffered']
    #allocation3 [shape = 's32[1]{0}', space=sflag, size = 0x4, scoped, tag = 'scoped memory for t_module_forward.1']
    %10 = vsyncpa [#allocation3], 0
    // Predicated region
    $region2: #{t_module_forward.1} parent=1 // pred_check
      _
    $region3: #{t_module_forward.1} parent=1 // pred_check_branch
      %12 = sbr.rel (0) target = $region5
    $region4: #{t_module_forward.1} parent=1 // pred_region
      _
    $region5: #{t_module_forward.1} parent=1 // pred_fallthru
      _
    // Predicated region
    $region6: #{t_module_forward.1} parent=1 // pred_check
      _
    $region7: #{t_module_forward.1} parent=1 // pred_check_branch
      %14 = sbr.rel (0) target = $region9
    $region8: #{t_module_forward.1} parent=1 // pred_region
      _
    $region9: #{t_module_forward.1} parent=1 // pred_fallthru
      _
    // Predicated region
    $region10: #{t_module_forward.1} parent=1 // pred_check
      _
    $region11: #{t_module_forward.1} parent=1 // pred_check_branch
      %16 = sbr.rel (0) target = $region13
    $region12: #{t_module_forward.1} parent=1 // pred_region
      _
    $region13: #{t_module_forward.1} parent=1 // pred_fallthru
      _
    // Predicated region
    $region14: #{t_module_forward.1} parent=1 // pred_check
      _
    $region15: #{t_module_forward.1} parent=1 // pred_check_branch
      %18 = sbr.rel (0) target = $region17
    $region16: #{t_module_forward.1} parent=1 // pred_region
      _
    $region17: #{t_module_forward.1} parent=1 // pred_fallthru
      _
    // Predicated region
    $region18: #{t_module_forward.1} parent=1 // pred_check
      _
    $region19: #{t_module_forward.1} parent=1 // pred_check_branch
      %20 = sbr.rel (0) target = $region21
    $region20: #{t_module_forward.1} parent=1 // pred_region
      _
    $region21: #{t_module_forward.1} parent=1 // pred_fallthru
      _
    %v22 = vld [vmem:[%s0] sm:$0xff]
    %v23 = vpack.c.bf16 %v22, %v22
    %v24 = vld [vmem:[%s1] sm:$0xf]
    %v25 = vld [vmem:[%s1 + $0x4] sm:$0xf]
    %v26 = vld [vmem:[%s2] sm:$0x1]
    %v28 = vlaneseq
    %v29 = vshrl.u32 %v28, 7
    %v30 = vsub.s32 0, %v29
    %v31 = vrot.slane %v26, %v30
    %v35 = vunpack.c.l.b16 %v24
    %v36 = vunpack.c.l.b16 %v25
    %v37 = vpack.c.b16 %v36, %v35
    %vm39 = vcmask 130048
    %v41 = vsel %vm39, %v23, 0
    %43 = vmatprep.subr.bf16.mxu0 0
    %44 = vmatpush1.bf16.msra.mxu0 0
    %45 = vmatprep.subr.bf16.mxu0 0
    %46 = vmatpush1.bf16.msra.mxu0 0
    %47 = vmatprep.subr.bf16.mxu0 0
    %48 = vmatpush1.bf16.msra.mxu0 0
    %49 = vmatprep.subr.bf16.mxu0 0
    %50 = vmatpush1.bf16.msra.mxu0 0
    %51 = vmatprep.subr.bf16.mxu0 0
    %52 = vmatpush1.bf16.msra.mxu0 0
    %53 = vmatprep.subr.bf16.mxu0 0
    %54 = vmatpush1.bf16.msra.mxu0 0
    %55 = vmatprep.subr.bf16.mxu0 0
    %56 = vmatpush1.bf16.msra.mxu0 0
    %57 = vmatprep.subr.bf16.mxu0 0
    %58 = vmatpush1.bf16.msra.mxu0 %v37
    %59 = vmatprep.subr.bf16.mxu0 0
    %60 = vmatpush2.bf16.msra.mxu0 0
    %61 = vmatprep.subr.bf16.mxu0 0
    %62 = vmatpush2.bf16.msra.mxu0 0
    %63 = vmatprep.subr.bf16.mxu0 0
    %64 = vmatpush2.bf16.msra.mxu0 0
    %65 = vmatprep.subr.bf16.mxu0 0
    %66 = vmatpush2.bf16.msra.mxu0 0
    %67 = vmatprep.subr.bf16.mxu0 0
    %68 = vmatpush2.bf16.msra.mxu0 0
    %69 = vmatprep.subr.bf16.mxu0 0
    %70 = vmatpush2.bf16.msra.mxu0 0
    %71 = vmatprep.subr.bf16.mxu0 0
    %72 = vmatpush2.bf16.msra.mxu0 0
    %73 = vmatprep.subr.bf16.mxu0 0
    %74 = vmatpush2.bf16.msra.mxu0 0
    %75 = vmatprep.mubr.bf16.mxu0 0
    %76 = vmatmul.mubr.bf16.gmra.mxu0 %v41
    %v77 = vpop.f32.mrf.mxu0
    %v78 = vadd.f32 %v31, %v77
    %v79 = vpop.f32.mrf.mxu0
    %v80 = vpop.f32.mrf.mxu0
    %v81 = vpop.f32.mrf.mxu0
    %82 = vdwg.mxu0
    %vm83 = vcmp.gt.f32.partialorder %v78, 0.0
    %v84 = vmul.f32 %v78, 0.01
    %v85 = vsel %vm83, %v78, %v84
    %v86 = vpack.c.bf16 %v85, %v85
    %v87 = vld [vmem:[%s3] sm:$0xf]
    %v88 = vld [vmem:[%s3 + $0x4] sm:$0xf]
    %v89 = vld [vmem:[%s3 + $0x8] sm:$0xf]
    %v90 = vld [vmem:[%s3 + $0xc] sm:$0xf]
    %v91 = vld [vmem:[%s3 + $0x10] sm:$0xf]
    %v92 = vld [vmem:[%s3 + $0x14] sm:$0xf]
    %v93 = vld [vmem:[%s3 + $0x18] sm:$0xf]
    %v94 = vld [vmem:[%s3 + $0x1c] sm:$0xf]
    %v95 = vld [vmem:[%s3 + $0x20] sm:$0xf]
    %v96 = vld [vmem:[%s3 + $0x24] sm:$0xf]
    %v97 = vld [vmem:[%s3 + $0x28] sm:$0xf]
    %v98 = vld [vmem:[%s3 + $0x2c] sm:$0xf]
    %v99 = vld [vmem:[%s3 + $0x30] sm:$0xf]
    %v100 = vld [vmem:[%s3 + $0x34] sm:$0xf]
    %v101 = vld [vmem:[%s3 + $0x38] sm:$0xf]
    %v102 = vld [vmem:[%s3 + $0x3c] sm:$0xf]
    %v103 = vld [vmem:[%s4] sm:$0x1]
    %v105 = vlaneseq
    %v106 = vshrl.u32 %v105, 7
    %v107 = vsub.s32 0, %v106
    %v108 = vrot.slane %v103, %v107
    %v126 = vunpack.c.l.b16 %v87
    %v127 = vunpack.c.l.b16 %v88
    %v128 = vunpack.c.l.b16 %v89
    %v129 = vunpack.c.l.b16 %v90
    %v130 = vunpack.c.l.b16 %v91
    %v131 = vunpack.c.l.b16 %v92
    %v132 = vunpack.c.l.b16 %v93
    %v133 = vunpack.c.l.b16 %v94
    %v134 = vunpack.c.l.b16 %v95
    %v135 = vunpack.c.l.b16 %v96
    %v136 = vunpack.c.l.b16 %v97
    %v137 = vunpack.c.l.b16 %v98
    %v138 = vunpack.c.l.b16 %v99
    %v139 = vunpack.c.l.b16 %v100
    %v140 = vunpack.c.l.b16 %v101
    %v141 = vunpack.c.l.b16 %v102
    %v142 = vpack.c.b16 %v127, %v126
    %v143 = vpack.c.b16 %v129, %v128
    %v144 = vpack.c.b16 %v131, %v130
    %v145 = vpack.c.b16 %v133, %v132
    %v146 = vpack.c.b16 %v135, %v134
    %v147 = vpack.c.b16 %v137, %v136
    %v148 = vpack.c.b16 %v139, %v138
    %v149 = vpack.c.b16 %v141, %v140
    %158 = vmatprep.subr.bf16.mxu0 0
    %159 = vmatpush1.bf16.msra.mxu0 %v149
    %160 = vmatprep.subr.bf16.mxu0 0
    %161 = vmatpush1.bf16.msra.mxu0 %v148
    %162 = vmatprep.subr.bf16.mxu0 0
    %163 = vmatpush1.bf16.msra.mxu0 %v147
    %164 = vmatprep.subr.bf16.mxu0 0
    %165 = vmatpush1.bf16.msra.mxu0 %v146
    %166 = vmatprep.subr.bf16.mxu0 0
    %167 = vmatpush1.bf16.msra.mxu0 %v145
    %168 = vmatprep.subr.bf16.mxu0 0
    %169 = vmatpush1.bf16.msra.mxu0 %v144
    %170 = vmatprep.subr.bf16.mxu0 0
    %171 = vmatpush1.bf16.msra.mxu0 %v143
    %172 = vmatprep.subr.bf16.mxu0 0
    %173 = vmatpush1.bf16.msra.mxu0 %v142
    %174 = vmatprep.subr.bf16.mxu0 0
    %175 = vmatpush2.bf16.msra.mxu0 0
    %176 = vmatprep.subr.bf16.mxu0 0
    %177 = vmatpush2.bf16.msra.mxu0 0
    %178 = vmatprep.subr.bf16.mxu0 0
    %179 = vmatpush2.bf16.msra.mxu0 0
    %180 = vmatprep.subr.bf16.mxu0 0
    %181 = vmatpush2.bf16.msra.mxu0 0
    %182 = vmatprep.subr.bf16.mxu0 0
    %183 = vmatpush2.bf16.msra.mxu0 0
    %184 = vmatprep.subr.bf16.mxu0 0
    %185 = vmatpush2.bf16.msra.mxu0 0
    %186 = vmatprep.subr.bf16.mxu0 0
    %187 = vmatpush2.bf16.msra.mxu0 0
    %188 = vmatprep.subr.bf16.mxu0 0
    %189 = vmatpush2.bf16.msra.mxu0 0
    %190 = vmatprep.mubr.bf16.mxu0 0
    %191 = vmatmul.mubr.bf16.gmra.mxu0 %v86
    %v192 = vpop.f32.mrf.mxu0
    %v193 = vadd.f32 %v108, %v192
    %v194 = vpop.f32.mrf.mxu0
    %v195 = vpop.f32.mrf.mxu0
    %v196 = vpop.f32.mrf.mxu0
    %197 = vdwg.mxu0
    %vm198 = vcmp.gt.f32.partialorder %v193, 0.0
    %v199 = vmul.f32 %v193, 0.01
    %v200 = vsel %vm198, %v193, %v199
    %vm201 = vcmask 261120
    %202 = vst.msk [vmem:[#allocation2] sm:$0xff] %vm201, %v200
    // Predicated region
    $region22: #{t_module_forward.1} parent=1 // pred_check
      _
    $region23: #{t_module_forward.1} parent=1 // pred_check_branch
      %204 = sbr.rel (0) target = $region25
    $region24: #{t_module_forward.1} parent=1 // pred_region
      %s206 = ssub.s32 128, 128
      %207 = vsyncadd [#allocation3], %s206
      %s209 = sshll.u32 [#allocation2], 4
      %s210 = int_to_ptr.vmem [resolvable:$true] %s209
      %212 = dma.vmem_to_hbm [thread:$0]  %s210, 128, %s5, [#allocation3]
    $region25: #{t_module_forward.1} parent=1 // pred_fallthru
      _
    // Predicated region
    $region26: #{t_module_forward.1} parent=1 // pred_check
      _
    $region27: #{t_module_forward.1} parent=1 // pred_check_branch
      %214 = sbr.rel (0) target = $region29
    $region28: #{t_module_forward.1} parent=1 // pred_region
      %215 = dma.done [#allocation3], 128
    $region29: #{t_module_forward.1} parent=1 // pred_fallthru
      _
    %216 = vsyncpa [#allocation3], 1

</llo_original>
